<compile_context>
chip_gen: v5e
topology: v5e:2x2
jax: 0.10.0
libtpu: 0.0.40
codegen_flags: <defaults>
</compile_context>

<pallas_src>
import jax
import jax.numpy as jnp
from jax.experimental import pallas as pl
from jax.experimental.pallas import tpu as pltpu

LEAKY_SLOPE = 0.01  # PyTorch nn.LeakyReLU default negative_slope
LANE = 128


def _round_up(x, m):
    return ((x + m - 1) // m) * m


def _leaky_relu(x):
    # mul + max (2 VALU ops); identical to where(x>0, x, s*x) for 0 < s < 1.
    return jnp.maximum(x, LEAKY_SLOPE * x)


def qoracle_kernel(s_ref, w1_ref, b1_ref, w2_ref, b2_ref, w3_ref, b3_ref, o_ref):
    """Fused MLP: Linear -> LeakyReLU -> Linear -> LeakyReLU -> Linear."""
    x = s_ref[...]  # (tb, state_dim) bf16

    h1 = jnp.dot(x, w1_ref[...], preferred_element_type=jnp.float32) + b1_ref[...]
    h1 = _leaky_relu(h1).astype(w2_ref.dtype)

    h2 = jnp.dot(h1, w2_ref[...], preferred_element_type=jnp.float32) + b2_ref[...]
    h2 = _leaky_relu(h2).astype(w3_ref.dtype)

    # w3/b3 are lane-padded to a multiple of 128 -> dense MXU pass, but only
    # the real out_dim columns leave VMEM (HBM writeback stays 4 B/row).
    out = jnp.dot(h2, w3_ref[...], preferred_element_type=jnp.float32) + b3_ref[...]
    o_ref[...] = out[:, : o_ref.shape[1]].astype(o_ref.dtype)


def _vmem_capacity_bytes():
    """Physical VMEM per TensorCore (64 MiB on v7x, 128 MiB on v5e/v6e)."""
    try:
        cap = getattr(pltpu.get_tpu_info(), "vmem_capacity_bytes", None)
        if cap:
            return int(cap)
    except Exception:
        pass
    return 64 << 20  # conservative fallback (v7x)


def qoracle_forward(s, params, *, batch_tile=16384, compute_dtype=jnp.bfloat16):
    """QOracleModel forward pass via a single fused pallas_call.

    s: (B, state_dim) float32 (or already compute_dtype -- avoids the cast pass)
    params: dict with w1 (S,H), b1 (1,H), w2 (H,2H), b2 (1,2H), w3 (2H,O), b3 (1,O)
    returns: (B, O) float32
    """
    w1, b1 = params["w1"], params["b1"]
    w2, b2 = params["w2"], params["b2"]
    w3, b3 = params["w3"], params["b3"]

    B, state_dim = s.shape
    hidden_dim = w1.shape[1]
    hidden2 = w2.shape[1]
    out_dim = w3.shape[1]
    out_lane = _round_up(out_dim, LANE)

    # ---- streamed operands in bf16; biases stay f32 (added to f32 acc) ----
    cd = jnp.dtype(compute_dtype)
    s_c = s if s.dtype == cd else s.astype(cd)  # no-op if caller passes bf16
    w1c = w1.astype(cd)
    w2c = w2.astype(cd)
    # w3/b3 lane-padded (zeros) for the MXU; padding never reaches HBM output.
    w3c = jnp.pad(w3, ((0, 0), (0, out_lane - out_dim))).astype(cd)
    b3p = jnp.pad(b3, ((0, 0), (0, out_lane - out_dim))).astype(jnp.float32)
    b1f = b1.astype(jnp.float32)
    b2f = b2.astype(jnp.float32)

    # ---- VMEM budget (Pallas allocates 2 buffers per input by default,
    #      including the constant-index weights, so count them twice) ----
    cb = cd.itemsize
    weight_bytes = 2 * (
        cb * (state_dim * hidden_dim + hidden_dim * hidden2 + hidden2 * out_lane)
        + 4 * (hidden_dim + hidden2 + out_lane)
    )

    def tile_bytes(tb):
        return (
            2 * tb * state_dim * cb                        # double-buffered input tile
            + 2 * tb * out_dim * 4                         # double-buffered output tile
            + tb * (hidden_dim + hidden2 + out_lane) * 4   # f32 temporaries
        )

    vmem_budget = int(_vmem_capacity_bytes() * 0.85)  # headroom for compiler scratch

    # ---- batch tiling: ragged last block (no input padding / extra HBM pass).
    # OOB rows of the last block compute on unspecified data but are never
    # stored (rows are independent), so outputs for rows < B are exact.
    if B <= 2 * LANE:
        tb = B  # one full-extent block (always a legal block shape)
    else:
        # At least 2 grid steps so the "parallel" batch axis can shard across
        # v7x's two TensorCores; round to 128 for clean lane/sublane tiling.
        half = _round_up(-(-B // 2), LANE)
        tb = min(_round_up(int(batch_tile), LANE), half)
        while tb > LANE and tile_bytes(tb) + weight_bytes > vmem_budget:
            tb = max(LANE, _round_up(tb // 2, LANE))
    grid = (pl.cdiv(B, tb),)

    needed = tile_bytes(tb) + weight_bytes + (4 << 20)
    vmem_limit = int(max(min(needed, vmem_budget), 16 << 20))

    # Weights/biases use constant index_maps so they stay VMEM-resident across
    # grid steps (no per-step re-DMA).  TODO(synk): single-buffer them via
    # pipeline_mode=pl.Buffered(1) once that path is exercised; for now their
    # default 2x buffering is accounted for in weight_bytes above.
    in_specs = [
        pl.BlockSpec((tb, state_dim), lambda i: (i, 0)),          # s (bf16)
        pl.BlockSpec((state_dim, hidden_dim), lambda i: (0, 0)),  # w1
        pl.BlockSpec((1, hidden_dim), lambda i: (0, 0)),          # b1
        pl.BlockSpec((hidden_dim, hidden2), lambda i: (0, 0)),    # w2
        pl.BlockSpec((1, hidden2), lambda i: (0, 0)),             # b2
        pl.BlockSpec((hidden2, out_lane), lambda i: (0, 0)),      # w3 (lane-padded)
        pl.BlockSpec((1, out_lane), lambda i: (0, 0)),            # b3 (lane-padded)
    ]
    out_specs = pl.BlockSpec((tb, out_dim), lambda i: (i, 0))     # true width only

    return pl.pallas_call(
        qoracle_kernel,
        out_shape=jax.ShapeDtypeStruct((B, out_dim), jnp.float32),
        grid_spec=pltpu.PrefetchScalarGridSpec(
            num_scalar_prefetch=0,
            grid=grid,
            in_specs=in_specs,
            out_specs=out_specs,
        ),
        compiler_params=pltpu.CompilerParams(
            dimension_semantics=("parallel",),
            vmem_limit_bytes=vmem_limit,
        ),
    )(s_c, w1c, b1f, w2c, b2f, w3c, b3p)


def init_params(key, state_dim, hidden_dim, out_dim=1):
    """Deterministic synthetic init (uniform, roughly PyTorch fan-in scale)."""
    ks = jax.random.split(key, 6)

    def lin(kw, kb, fan_in, fan_out):
        bound = 1.0 / jnp.sqrt(jnp.float32(fan_in))
        w = jax.random.uniform(kw, (fan_in, fan_out), jnp.float32, -bound, bound)
        b = jax.random.uniform(kb, (1, fan_out), jnp.float32, -bound, bound)
        return w, b

    w1, b1 = lin(ks[0], ks[1], state_dim, hidden_dim)
    w2, b2 = lin(ks[2], ks[3], hidden_dim, hidden_dim * 2)
    w3, b3 = lin(ks[4], ks[5], hidden_dim * 2, out_dim)
    return {"w1": w1, "b1": b1, "w2": w2, "b2": b2, "w3": w3, "b3": b3}


def qoracle_ref(s, p, compute_dtype=jnp.bfloat16):
    """Pure-JAX reference mirroring the kernel's bf16-operand / f32-acc math."""
    cd = jnp.dtype(compute_dtype)
    h1 = _leaky_relu(
        jnp.dot(s.astype(cd), p["w1"].astype(cd), preferred_element_type=jnp.float32)
        + p["b1"]
    )
    h2 = _leaky_relu(
        jnp.dot(h1.astype(cd), p["w2"].astype(cd), preferred_element_type=jnp.float32)
        + p["b2"]
    )
    return (
        jnp.dot(h2.astype(cd), p["w3"].astype(cd), preferred_element_type=jnp.float32)
        + p["b3"]
    )


if __name__ == "__main__":
    key = jax.random.PRNGKey(0)
    k_params, k_s, k_s2 = jax.random.split(key, 3)

    batch, state_dim, hidden_dim, out_dim = 8, 16, 32, 1
    params = init_params(k_params, state_dim, hidden_dim, out_dim)

    # Small batch: single full-extent block.
    s = jax.random.normal(k_s, (batch, state_dim), jnp.float32)
    out = jax.block_until_ready(qoracle_forward(s, params))
    ref = qoracle_ref(s, params)
    assert out.shape == (batch, out_dim), f"bad shape {out.shape}"
    assert jnp.allclose(out, ref, atol=2e-3, rtol=2e-3), "mismatch (small batch)"

    # Tiled path: grid of 2 with a ragged last block (300 = 256 + 44 rows).
    batch2 = 300
    s2 = jax.random.normal(k_s2, (batch2, state_dim), jnp.float32)
    out2 = jax.block_until_ready(qoracle_forward(s2, params))
    ref2 = qoracle_ref(s2, params)
    assert out2.shape == (batch2, out_dim), f"bad shape {out2.shape}"
    assert jnp.allclose(out2, ref2, atol=2e-3, rtol=2e-3), "mismatch (ragged batch)"

    print("KERNEL_OK")
</pallas_src>

<mosaic_0001>
module attributes {stable_mosaic.version = 11 : i64} {
  func.func @qoracle_kernel(%arg0: i32, %arg1: memref<8x16xbf16, #tpu.memory_space<vmem>>, %arg2: memref<16x32xbf16, #tpu.memory_space<vmem>>, %arg3: memref<1x32xf32, #tpu.memory_space<vmem>>, %arg4: memref<32x64xbf16, #tpu.memory_space<vmem>>, %arg5: memref<1x64xf32, #tpu.memory_space<vmem>>, %arg6: memref<64x128xbf16, #tpu.memory_space<vmem>>, %arg7: memref<1x128xf32, #tpu.memory_space<vmem>>, %arg8: memref<8x1xf32, #tpu.memory_space<vmem>>) attributes {dimension_semantics = [#tpu.dimension_semantics<parallel>], iteration_bounds = array<i64: 1>, scalar_prefetch = 0 : i64, scratch_operands = 0 : i64, tpu.core_type = #tpu.core_type<tc>, window_params = [{transform_indices = @transform_0, window_bounds = array<i64: 8, 16>}, {pipeline_mode = #tpu.pipeline_mode<synchronous>, transform_indices = @transform_1, window_bounds = array<i64: 16, 32>}, {pipeline_mode = #tpu.pipeline_mode<synchronous>, transform_indices = @transform_2, window_bounds = array<i64: 1, 32>}, {pipeline_mode = #tpu.pipeline_mode<synchronous>, transform_indices = @transform_3, window_bounds = array<i64: 32, 64>}, {pipeline_mode = #tpu.pipeline_mode<synchronous>, transform_indices = @transform_4, window_bounds = array<i64: 1, 64>}, {pipeline_mode = #tpu.pipeline_mode<synchronous>, transform_indices = @transform_5, window_bounds = array<i64: 64, 128>}, {pipeline_mode = #tpu.pipeline_mode<synchronous>, transform_indices = @transform_6, window_bounds = array<i64: 1, 128>}, {transform_indices = @transform_7, window_bounds = array<i64: 8, 1>}]} {
    %c0 = arith.constant 0 : index
    %c0_0 = arith.constant 0 : index
    %0 = vector.load %arg1[%c0, %c0_0] : memref<8x16xbf16, #tpu.memory_space<vmem>>, vector<8x16xbf16>
    %c0_1 = arith.constant 0 : index
    %c0_2 = arith.constant 0 : index
    %1 = vector.load %arg2[%c0_1, %c0_2] : memref<16x32xbf16, #tpu.memory_space<vmem>>, vector<16x32xbf16>
    %cst = arith.constant dense<0.000000e+00> : vector<8x32xf32>
    %2 = tpu.matmul %0, %1, %cst {dimension_numbers = #tpu.dot_dimension_numbers<[1], [0], [0], [1], [0, 0, 1, 1], [], []>} : vector<8x16xbf16>, vector<16x32xbf16>, vector<8x32xf32> -> vector<8x32xf32>
    %c0_3 = arith.constant 0 : index
    %c0_4 = arith.constant 0 : index
    %3 = vector.load %arg3[%c0_3, %c0_4] : memref<1x32xf32, #tpu.memory_space<vmem>>, vector<1x32xf32>
    %4 = vector.broadcast %3 : vector<1x32xf32> to vector<8x32xf32>
    %5 = arith.addf %2, %4 : vector<8x32xf32>
    %cst_5 = arith.constant 0.00999999977 : f32
    %6 = vector.broadcast %cst_5 : f32 to vector<8x32xf32>
    %7 = arith.mulf %6, %5 : vector<8x32xf32>
    %8 = arith.maximumf %5, %7 : vector<8x32xf32>
    %9 = arith.truncf %8 : vector<8x32xf32> to vector<8x32xbf16>
    %c0_6 = arith.constant 0 : index
    %c0_7 = arith.constant 0 : index
    %10 = vector.load %arg4[%c0_6, %c0_7] : memref<32x64xbf16, #tpu.memory_space<vmem>>, vector<32x64xbf16>
    %cst_8 = arith.constant dense<0.000000e+00> : vector<8x64xf32>
    %11 = tpu.matmul %9, %10, %cst_8 {dimension_numbers = #tpu.dot_dimension_numbers<[1], [0], [0], [1], [0, 0, 1, 1], [], []>} : vector<8x32xbf16>, vector<32x64xbf16>, vector<8x64xf32> -> vector<8x64xf32>
    %c0_9 = arith.constant 0 : index
    %c0_10 = arith.constant 0 : index
    %12 = vector.load %arg5[%c0_9, %c0_10] : memref<1x64xf32, #tpu.memory_space<vmem>>, vector<1x64xf32>
    %13 = vector.broadcast %12 : vector<1x64xf32> to vector<8x64xf32>
    %14 = arith.addf %11, %13 : vector<8x64xf32>
    %cst_11 = arith.constant 0.00999999977 : f32
    %15 = vector.broadcast %cst_11 : f32 to vector<8x64xf32>
    %16 = arith.mulf %15, %14 : vector<8x64xf32>
    %17 = arith.maximumf %14, %16 : vector<8x64xf32>
    %18 = arith.truncf %17 : vector<8x64xf32> to vector<8x64xbf16>
    %c0_12 = arith.constant 0 : index
    %c0_13 = arith.constant 0 : index
    %19 = vector.load %arg6[%c0_12, %c0_13] : memref<64x128xbf16, #tpu.memory_space<vmem>>, vector<64x128xbf16>
    %cst_14 = arith.constant dense<0.000000e+00> : vector<8x128xf32>
    %20 = tpu.matmul %18, %19, %cst_14 {dimension_numbers = #tpu.dot_dimension_numbers<[1], [0], [0], [1], [0, 0, 1, 1], [], []>} : vector<8x64xbf16>, vector<64x128xbf16>, vector<8x128xf32> -> vector<8x128xf32>
    %c0_15 = arith.constant 0 : index
    %c0_16 = arith.constant 0 : index
    %21 = vector.load %arg7[%c0_15, %c0_16] : memref<1x128xf32, #tpu.memory_space<vmem>>, vector<1x128xf32>
    %22 = vector.broadcast %21 : vector<1x128xf32> to vector<8x128xf32>
    %23 = arith.addf %20, %22 : vector<8x128xf32>
    %24 = vector.extract_strided_slice %23 {offsets = [0, 0], sizes = [8, 1], strides = [1, 1]} : vector<8x128xf32> to vector<8x1xf32>
    %c0_17 = arith.constant 0 : index
    %c0_18 = arith.constant 0 : index
    %25 = vector.load %arg8[%c0_17, %c0_18] : memref<8x1xf32, #tpu.memory_space<vmem>>, vector<8x1xf32>
    tpu.vector_store %arg8[%c0_17, %c0_18], %24 {strides = array<i32>} : memref<8x1xf32, #tpu.memory_space<vmem>>, vector<8x1xf32>,
    return
  }
  func.func @transform_0(%arg0: i32) -> (i32, i32) {
    %c0_i32 = arith.constant 0 : i32
    %c0_i32_0 = arith.constant 0 : i32
    return %arg0, %c0_i32 : i32, i32
  }
  func.func @transform_1(%arg0: i32) -> (i32, i32) {
    %c0_i32 = arith.constant 0 : i32
    %c0_i32_0 = arith.constant 0 : i32
    %c0_i32_1 = arith.constant 0 : i32
    return %c0_i32, %c0_i32_0 : i32, i32
  }
  func.func @transform_2(%arg0: i32) -> (i32, i32) {
    %c0_i32 = arith.constant 0 : i32
    %c0_i32_0 = arith.constant 0 : i32
    %c0_i32_1 = arith.constant 0 : i32
    return %c0_i32, %c0_i32_0 : i32, i32
  }
  func.func @transform_3(%arg0: i32) -> (i32, i32) {
    %c0_i32 = arith.constant 0 : i32
    %c0_i32_0 = arith.constant 0 : i32
    %c0_i32_1 = arith.constant 0 : i32
    return %c0_i32, %c0_i32_0 : i32, i32
  }
  func.func @transform_4(%arg0: i32) -> (i32, i32) {
    %c0_i32 = arith.constant 0 : i32
    %c0_i32_0 = arith.constant 0 : i32
    %c0_i32_1 = arith.constant 0 : i32
    return %c0_i32, %c0_i32_0 : i32, i32
  }
  func.func @transform_5(%arg0: i32) -> (i32, i32) {
    %c0_i32 = arith.constant 0 : i32
    %c0_i32_0 = arith.constant 0 : i32
    %c0_i32_1 = arith.constant 0 : i32
    return %c0_i32, %c0_i32_0 : i32, i32
  }
  func.func @transform_6(%arg0: i32) -> (i32, i32) {
    %c0_i32 = arith.constant 0 : i32
    %c0_i32_0 = arith.constant 0 : i32
    %c0_i32_1 = arith.constant 0 : i32
    return %c0_i32, %c0_i32_0 : i32, i32
  }
  func.func @transform_7(%arg0: i32) -> (i32, i32) {
    %c0_i32 = arith.constant 0 : i32
    %c0_i32_0 = arith.constant 0 : i32
    return %arg0, %c0_i32 : i32, i32
  }
}

</mosaic_0001>

<llo_original>
// kernel: tpu_custom_call.1
$region0: #{tpu_custom_call.1}
  #allocation0 [shape = 'u32[]', space=smem, size = 0x4, offset = 0x4, fixed_abs, tag = 'smem constant byte address 0x4 - core index']
  #allocation1 [shape = 'u32[72,128]{1,0:T(1,128)}', space=vmem, size = 0x9000, scoped, tag = 'internal scratch']
  %s0 = inlined_call_operand.hbm [shape: bf16[8,16], index: 0, kind: input, shape index: {}]
  %s1 = inlined_call_operand.hbm [shape: bf16[16,32], index: 1, kind: input, shape index: {}]
  %s2 = inlined_call_operand.vmem [shape: f32[1,32], index: 2, kind: input, shape index: {}]
  %s3 = inlined_call_operand.hbm [shape: bf16[32,64], index: 3, kind: input, shape index: {}]
  %s4 = inlined_call_operand.vmem [shape: f32[1,64], index: 4, kind: input, shape index: {}]
  %s5 = inlined_call_operand.hbm [shape: bf16[64,128], index: 5, kind: input, shape index: {}]
  %s6 = inlined_call_operand.vmem [shape: f32[1,128], index: 6, kind: input, shape index: {}]
  %s7 = inlined_call_operand.vmem [shape: f32[8,1], index: 7, kind: output, shape index: {}]
  %s8 = sld [smem:[#allocation0]]
  $region54: #{tpu_custom_call.1} parent=0
    _
  %s10 = ssub.s32 1, %s8
  %s11 = scalar_select 0, %s10, %s8
  $region1: #{tpu_custom_call.1} parent=0
    #allocation2 [shape = 'u8[2048]{0}', space=vmem, size = 0x800, scoped, tag = 'input window, operand 0, single buffered']
    #allocation3 [shape = 's32[1]{0}', space=sflag, size = 0x4, scoped, tag = 'scoped memory for tpu_custom_call.1']
    #allocation4 [shape = 'u8[4096]{0}', space=vmem, size = 0x1000, scoped, tag = 'input window, operand 1, single buffered']
    #allocation5 [shape = 's32[1]{0}', space=sflag, size = 0x4, scoped, tag = 'scoped memory for tpu_custom_call.1']
    #allocation6 [shape = 'u8[8192]{0}', space=vmem, size = 0x2000, scoped, tag = 'input window, operand 3, single buffered']
    #allocation7 [shape = 'u8[16384]{0}', space=vmem, size = 0x4000, scoped, tag = 'input window, operand 5, single buffered']
    #allocation8 [shape = 's32[1]{0}', space=sflag, size = 0x4, scoped, tag = 'scoped memory for tpu_custom_call.1']
    %12 = vsyncpa [#allocation3], 0
    %13 = vsyncpa [#allocation5], 0
    %14 = vsyncpa [#allocation8], 0
    // Predicated region
    $region2: #{tpu_custom_call.1} parent=1 // pred_check
      _
    $region3: #{tpu_custom_call.1} parent=1 // pred_check_branch
      %16 = sbr.rel (0) target = $region5
    $region4: #{tpu_custom_call.1} parent=1 // pred_region
      %18 = vsyncadd [#allocation3], 0
      %s20 = sshll.u32 %s0, 4
      %s21 = int_to_ptr.hbm [resolvable:$true] %s20
      %s22 = sshll.u32 [#allocation2], 4
      %s23 = int_to_ptr.vmem [resolvable:$true] %s22
      %25 = dma.hbm_to_vmem [thread:$0]  %s21, 64, %s23, [#allocation3]
    $region5: #{tpu_custom_call.1} parent=1 // pred_fallthru
      _
    // Predicated region
    $region6: #{tpu_custom_call.1} parent=1 // pred_check
      _
    $region7: #{tpu_custom_call.1} parent=1 // pred_check_branch
      %27 = sbr.rel (0) target = $region9
    $region8: #{tpu_custom_call.1} parent=1 // pred_region
      %29 = vsyncadd [#allocation5], 0
      %s30 = sshll.u32 %s1, 4
      %s31 = int_to_ptr.hbm [resolvable:$true] %s30
      %s32 = sshll.u32 [#allocation4], 4
      %s33 = int_to_ptr.vmem [resolvable:$true] %s32
      %38 = dma.hbm_to_vmem [thread:$0]  %s31, 128, %s33, [#allocation5], 64, 64, 4
    $region9: #{tpu_custom_call.1} parent=1 // pred_fallthru
      _
    // Predicated region
    $region10: #{tpu_custom_call.1} parent=1 // pred_check
      _
    $region11: #{tpu_custom_call.1} parent=1 // pred_check_branch
      %40 = sbr.rel (0) target = $region13
    $region12: #{tpu_custom_call.1} parent=1 // pred_region
      _
    $region13: #{tpu_custom_call.1} parent=1 // pred_fallthru
      _
    // Predicated region
    $region14: #{tpu_custom_call.1} parent=1 // pred_check
      _
    $region15: #{tpu_custom_call.1} parent=1 // pred_check_branch
      %42 = sbr.rel (0) target = $region17
    $region16: #{tpu_custom_call.1} parent=1 // pred_region
      %44 = vsyncadd [#allocation5], 0
      %s45 = sshll.u32 %s3, 4
      %s46 = int_to_ptr.hbm [resolvable:$true] %s45
      %s47 = sshll.u32 [#allocation6], 4
      %s48 = int_to_ptr.vmem [resolvable:$true] %s47
      %53 = dma.hbm_to_vmem [thread:$0]  %s46, 256, %s48, [#allocation5], 64, 64, 4
    $region17: #{tpu_custom_call.1} parent=1 // pred_fallthru
      _
    // Predicated region
    $region18: #{tpu_custom_call.1} parent=1 // pred_check
      _
    $region19: #{tpu_custom_call.1} parent=1 // pred_check_branch
      %55 = sbr.rel (0) target = $region21
    $region20: #{tpu_custom_call.1} parent=1 // pred_region
      _
    $region21: #{tpu_custom_call.1} parent=1 // pred_fallthru
      _
    // Predicated region
    $region22: #{tpu_custom_call.1} parent=1 // pred_check
      _
    $region23: #{tpu_custom_call.1} parent=1 // pred_check_branch
      %57 = sbr.rel (0) target = $region25
    $region24: #{tpu_custom_call.1} parent=1 // pred_region
      %59 = vsyncadd [#allocation8], 0
      %s60 = sshll.u32 %s5, 4
      %s61 = int_to_ptr.hbm [resolvable:$true] %s60
      %s62 = sshll.u32 [#allocation7], 4
      %s63 = int_to_ptr.vmem [resolvable:$true] %s62
      %68 = dma.hbm_to_vmem [thread:$0]  %s61, 512, %s63, [#allocation8], 64, 64, 4
    $region25: #{tpu_custom_call.1} parent=1 // pred_fallthru
      _
    // Predicated region
    $region26: #{tpu_custom_call.1} parent=1 // pred_check
      _
    $region27: #{tpu_custom_call.1} parent=1 // pred_check_branch
      %70 = sbr.rel (0) target = $region29
    $region28: #{tpu_custom_call.1} parent=1 // pred_region
      _
    $region29: #{tpu_custom_call.1} parent=1 // pred_fallthru
      _
    // Predicated region
    $region30: #{tpu_custom_call.1} parent=1 // pred_check
      _
    $region31: #{tpu_custom_call.1} parent=1 // pred_check_branch
      %72 = sbr.rel (0) target = $region33
    $region32: #{tpu_custom_call.1} parent=1 // pred_region
      %74 = dma.done [#allocation3], 64
    $region33: #{tpu_custom_call.1} parent=1 // pred_fallthru
      _
    // Predicated region
    $region34: #{tpu_custom_call.1} parent=1 // pred_check
      _
    $region35: #{tpu_custom_call.1} parent=1 // pred_check_branch
      %76 = sbr.rel (0) target = $region37
    $region36: #{tpu_custom_call.1} parent=1 // pred_region
      %78 = dma.done [#allocation5], 128
    $region37: #{tpu_custom_call.1} parent=1 // pred_fallthru
      _
    // Predicated region
    $region38: #{tpu_custom_call.1} parent=1 // pred_check
      _
    $region39: #{tpu_custom_call.1} parent=1 // pred_check_branch
      %80 = sbr.rel (0) target = $region41
    $region40: #{tpu_custom_call.1} parent=1 // pred_region
      %82 = dma.done [#allocation5], 256
    $region41: #{tpu_custom_call.1} parent=1 // pred_fallthru
      _
    // Predicated region
    $region42: #{tpu_custom_call.1} parent=1 // pred_check
      _
    $region43: #{tpu_custom_call.1} parent=1 // pred_check_branch
      %84 = sbr.rel (0) target = $region45
    $region44: #{tpu_custom_call.1} parent=1 // pred_region
      %86 = dma.done [#allocation8], 512
    $region45: #{tpu_custom_call.1} parent=1 // pred_fallthru
      _
    %v88 = vld [vmem:[#allocation2] sm:$0xf]
    %v89 = vld [vmem:[#allocation4] sm:$0xf]
    %v90 = vld [vmem:[#allocation4 + $0x4] sm:$0xf]
    %v91 = vld [vmem:[%s2] sm:$0x1]
    %v93 = vperm.slane %v91, 0
    %v97 = vunpack.c.l.b16 %v89
    %v98 = vunpack.c.l.b16 %v90
    %v99 = vpack.c.b16 %v98, %v97
    %vm101 = vcmask 130048
    %v103 = vsel %vm101, %v88, 0
    %105 = vmatpush.bf16.msra.mxu0 0
    %106 = vmatpush.bf16.msra.mxu0 0
    %107 = vmatpush.bf16.msra.mxu0 0
    %108 = vmatpush.bf16.msra.mxu0 0
    %109 = vmatpush.bf16.msra.mxu0 0
    %110 = vmatpush.bf16.msra.mxu0 0
    %111 = vmatpush.bf16.msra.mxu0 0
    %112 = vmatpush.bf16.msra.mxu0 %v99
    %113 = vmatmul.bf16.gmra.mxu0 %v103
    %v114 = vpop.f32.mrf.mxu0
    %v115 = vadd.f32 %v93, %v114
    %v116 = vpop.f32.mrf.mxu0
    %117 = vdwg.mxu0
    %v118 = vmul.f32 %v115, 0.01
    %v119 = vmax.f32 %v115, %v118
    %v120 = vpack.c.bf16 %v119, %v119
    %v121 = vld [vmem:[#allocation6] sm:$0xf]
    %v122 = vld [vmem:[#allocation6 + $0x4] sm:$0xf]
    %v123 = vld [vmem:[#allocation6 + $0x8] sm:$0xf]
    %v124 = vld [vmem:[#allocation6 + $0xc] sm:$0xf]
    %v125 = vld [vmem:[%s4] sm:$0x1]
    %v127 = vperm.slane %v125, 0
    %v133 = vunpack.c.l.b16 %v121
    %v134 = vunpack.c.l.b16 %v122
    %v135 = vunpack.c.l.b16 %v123
    %v136 = vunpack.c.l.b16 %v124
    %v137 = vpack.c.b16 %v134, %v133
    %v138 = vpack.c.b16 %v136, %v135
    %vm141 = vcmask 261120
    %v143 = vsel %vm141, %v120, 0
    %145 = vmatpush.bf16.msra.mxu0 0
    %146 = vmatpush.bf16.msra.mxu0 0
    %147 = vmatpush.bf16.msra.mxu0 0
    %148 = vmatpush.bf16.msra.mxu0 0
    %149 = vmatpush.bf16.msra.mxu0 0
    %150 = vmatpush.bf16.msra.mxu0 0
    %151 = vmatpush.bf16.msra.mxu0 %v138
    %152 = vmatpush.bf16.msra.mxu0 %v137
    %153 = vmatmul.bf16.gmra.mxu0 %v143
    %v154 = vpop.f32.mrf.mxu0
    %v155 = vadd.f32 %v127, %v154
    %v156 = vpop.f32.mrf.mxu0
    %157 = vdwg.mxu0
    %v158 = vmul.f32 %v155, 0.01
    %v159 = vmax.f32 %v155, %v158
    %v160 = vpack.c.bf16 %v159, %v159
    %v161 = vld [vmem:[#allocation7] sm:$0xf]
    %v162 = vld [vmem:[#allocation7 + $0x4] sm:$0xf]
    %v163 = vld [vmem:[#allocation7 + $0x8] sm:$0xf]
    %v164 = vld [vmem:[#allocation7 + $0xc] sm:$0xf]
    %v165 = vld [vmem:[#allocation7 + $0x10] sm:$0xf]
    %v166 = vld [vmem:[#allocation7 + $0x14] sm:$0xf]
    %v167 = vld [vmem:[#allocation7 + $0x18] sm:$0xf]
    %v168 = vld [vmem:[#allocation7 + $0x1c] sm:$0xf]
    %v169 = vld [vmem:[%s6] sm:$0x1]
    %v171 = vperm.slane %v169, 0
    %v181 = vunpack.c.l.b16 %v161
    %v182 = vunpack.c.l.b16 %v162
    %v183 = vunpack.c.l.b16 %v163
    %v184 = vunpack.c.l.b16 %v164
    %v185 = vunpack.c.l.b16 %v165
    %v186 = vunpack.c.l.b16 %v166
    %v187 = vunpack.c.l.b16 %v167
    %v188 = vunpack.c.l.b16 %v168
    %v189 = vpack.c.b16 %v182, %v181
    %v190 = vpack.c.b16 %v184, %v183
    %v191 = vpack.c.b16 %v186, %v185
    %v192 = vpack.c.b16 %v188, %v187
    %vm197 = vcmask 523264
    %v199 = vsel %vm197, %v160, 0
    %201 = vmatpush.bf16.msra.mxu0 0
    %202 = vmatpush.bf16.msra.mxu0 0
    %203 = vmatpush.bf16.msra.mxu0 0
    %204 = vmatpush.bf16.msra.mxu0 0
    %205 = vmatpush.bf16.msra.mxu0 %v192
    %206 = vmatpush.bf16.msra.mxu0 %v191
    %207 = vmatpush.bf16.msra.mxu0 %v190
    %208 = vmatpush.bf16.msra.mxu0 %v189
    %209 = vmatmul.bf16.gmra.mxu0 %v199
    %v210 = vpop.f32.mrf.mxu0
    %v211 = vadd.f32 %v171, %v210
    %v212 = vpop.f32.mrf.mxu0
    %213 = vdwg.mxu0
    %vm214 = vcmask 7168
    %215 = vst.msk [vmem:[%s7] sm:$0xff] %vm214, %v211
    // Predicated region
    $region46: #{tpu_custom_call.1} parent=1 // pred_check
      _
    $region47: #{tpu_custom_call.1} parent=1 // pred_check_branch
      %217 = sbr.rel (0) target = $region49
    $region48: #{tpu_custom_call.1} parent=1 // pred_region
      _
    $region49: #{tpu_custom_call.1} parent=1 // pred_fallthru
      _
    // Predicated region
    $region50: #{tpu_custom_call.1} parent=1 // pred_check
      _
    $region51: #{tpu_custom_call.1} parent=1 // pred_check_branch
      %219 = sbr.rel (0) target = $region53
    $region52: #{tpu_custom_call.1} parent=1 // pred_region
      _
    $region53: #{tpu_custom_call.1} parent=1 // pred_fallthru
      _
    %220 = vsyncpa [#allocation3], 1
    %221 = vsyncpa [#allocation5], 1
    %222 = vsyncpa [#allocation8], 1

</llo_original>
